<compile_context>
chip_gen: v5e
topology: v5e:2x2
jax: 0.10.0
libtpu: 0.0.40
codegen_flags: <defaults>
</compile_context>

<pallas_src>
import functools

import jax
import jax.numpy as jnp
from jax.experimental import pallas as pl
from jax.experimental.pallas import tpu as pltpu

_LANES = 128
_SUBLANES = 8
_ROW_ALIGN = 32                    # covers f32(8) / bf16(16) / int8(32) sublane packing
_TARGET_TILE_BYTES = 1 << 20       # ~1 MiB of real payload per mel operand per step
_MAX_TILE_VMEM_BYTES = 2 << 20     # VMEM footprint cap per operand per pipeline buffer


def _round_up(x, m):
    return ((x + m - 1) // m) * m


def _round_down(x, m):
    return (x // m) * m


def _to_lane_slab(x, rows):
    """Flatten to f32 and zero-pad into a lane-dense (rows, 128) slab (tiny arrays only)."""
    flat = jnp.asarray(x, dtype=jnp.float32).reshape(-1)
    pad = rows * _LANES - flat.shape[0]
    return jnp.pad(flat, (0, pad)).reshape(rows, _LANES)


def _mel_tiling(n_rows, n_cols, itemsize, max_tile_rows=None):
    """Pick (tile_rows, num_tiles) sized to the data (no wrapper-side padding)."""
    lane_padded = _round_up(n_cols, _LANES)
    rows_target = _round_down(_TARGET_TILE_BYTES // max(1, n_cols * itemsize), _ROW_ALIGN)
    rows_cap = _round_down(_MAX_TILE_VMEM_BYTES // max(1, lane_padded * itemsize), _ROW_ALIGN)
    rows_target = max(_ROW_ALIGN, min(rows_target, rows_cap))
    if max_tile_rows is not None:
        rows_target = max(_ROW_ALIGN, min(rows_target, _round_down(max_tile_rows, _ROW_ALIGN)))
    if n_rows <= rows_target:
        return n_rows, 1            # single full-extent block; no alignment constraint
    num_tiles = -(-n_rows // rows_target)
    tile_rows = _round_up(-(-n_rows // num_tiles), _ROW_ALIGN)
    num_tiles = -(-n_rows // tile_rows)
    if num_tiles <= 1:
        return n_rows, 1
    return tile_rows, num_tiles


def _fastspeech_loss_kernel(mel_out_ref, mel_tgt_ref, pt_ref, loss_ref, acc_ref,
                            *, tile_rows, n_valid_rows, inv_n_mel, inv_counts,
                            mask_tail):
    i = pl.program_id(0)

    @pl.when(i == 0)
    def _init():
        acc_ref[...] = jnp.zeros_like(acc_ref)

    # Mel sum-of-squares for this row tile.  Pure VPU work: subtract, square,
    # row-sum into a lane-wide vector accumulator (no scalar round trip).
    d = mel_out_ref[...].astype(jnp.float32) - mel_tgt_ref[...].astype(jnp.float32)
    if mask_tail:
        rows = jax.lax.broadcasted_iota(jnp.int32, d.shape, 0) + i * tile_rows
        d = jnp.where(rows < n_valid_rows, d, 0.0)
    acc_ref[...] += jnp.sum(d * d, axis=0, keepdims=True)

    @pl.when(i == pl.num_programs(0) - 1)
    def _finalize():
        mel_loss = jnp.sum(acc_ref[...]) * inv_n_mel

        # duration / energy / pitch MSE vs log(target + 1).  pt_ref is the
        # merged (2, 3, g, 128) slab: [0] = predictions, [1] = targets.
        # TODO(synk): jnp.log1p(tgt) would be marginally more accurate for
        # small targets; kept as log(x + 1) to mirror torch.log(x + 1) and to
        # stay on ops with guaranteed Mosaic lowerings.
        pred = pt_ref[0].astype(jnp.float32)
        tgt = pt_ref[1].astype(jnp.float32)
        diff = pred - jnp.log(tgt + 1.0)
        sq = diff * diff
        pred_loss = (jnp.sum(sq[0]) * inv_counts[0]
                     + jnp.sum(sq[1]) * inv_counts[1]
                     + jnp.sum(sq[2]) * inv_counts[2])

        loss_ref[0, 0] = mel_loss + pred_loss


def fastspeech_loss(mel_output, mel_target,
                    duration_predicted, duration,
                    energy_predicted, energy_target,
                    pitch_predicted, pitch_target,
                    *, max_tile_rows=None):
    """mel MSE + 3 predictor MSEs against log(target + 1).  Returns an f32 scalar."""
    mel_out = jnp.asarray(mel_output)
    mel_tgt = jnp.asarray(mel_target)
    if mel_out.shape != mel_tgt.shape:
        raise ValueError("mel_output / mel_target shape mismatch")

    # ---- mel: free reshape to (rows, n_mels); no materialized padding ----
    m = int(mel_out.shape[-1])
    n_mel = int(mel_out.size)
    n_rows = n_mel // m
    mel_out2 = mel_out.reshape(n_rows, m)        # metadata-only (contiguous)
    mel_tgt2 = mel_tgt.reshape(n_rows, m)

    itemsize = int(mel_out2.dtype.itemsize)
    tile_rows, num_tiles = _mel_tiling(n_rows, m, itemsize, max_tile_rows)
    mask_tail = (num_tiles * tile_rows != n_rows)

    # ---- predictors: merge the three (pred, target) pairs into one slab ----
    preds = (duration_predicted, energy_predicted, pitch_predicted)
    tgts = (duration, energy_target, pitch_target)
    counts = tuple(int(x.size) for x in preds)
    g_rows = _round_up(max(-(-c // _LANES) for c in counts), _SUBLANES)
    slab = jnp.stack([jnp.stack([_to_lane_slab(x, g_rows) for x in preds]),
                      jnp.stack([_to_lane_slab(x, g_rows) for x in tgts])])  # (2,3,g,128)

    kernel = functools.partial(
        _fastspeech_loss_kernel,
        tile_rows=tile_rows,
        n_valid_rows=n_rows,
        inv_n_mel=1.0 / float(n_mel),
        inv_counts=tuple(1.0 / float(c) for c in counts),
        mask_tail=mask_tail,
    )

    mel_spec = pl.BlockSpec((tile_rows, m), lambda i: (i, 0))
    pt_spec = pl.BlockSpec((2, 3, g_rows, _LANES), lambda i: (0, 0, 0, 0))
    out_spec = pl.BlockSpec((1, 1), lambda i: (0, 0),
                            memory_space=pltpu.MemorySpace.SMEM)

    n_pred_elems = 3 * g_rows * _LANES
    cost = pl.CostEstimate(
        flops=int(3 * n_rows * m + 5 * n_pred_elems),
        transcendentals=int(n_pred_elems),
        bytes_accessed=int(2 * n_rows * m * itemsize + 2 * 4 * n_pred_elems + 4),
    )

    loss = pl.pallas_call(
        kernel,
        out_shape=jax.ShapeDtypeStruct((1, 1), jnp.float32),
        grid_spec=pltpu.PrefetchScalarGridSpec(
            num_scalar_prefetch=0,
            grid=(num_tiles,),
            in_specs=[mel_spec, mel_spec, pt_spec],
            out_specs=out_spec,
            scratch_shapes=[pltpu.VMEM((1, m), jnp.float32)],
        ),
        compiler_params=pltpu.CompilerParams(
            dimension_semantics=("arbitrary",)),
        cost_estimate=cost,
    )(mel_out2, mel_tgt2, slab)

    return loss[0, 0]


def _reference_loss(mel_output, mel_target,
                    duration_predicted, duration,
                    energy_predicted, energy_target,
                    pitch_predicted, pitch_target):
    mel_loss = jnp.mean((mel_output - mel_target) ** 2)
    dur_loss = jnp.mean(
        (duration_predicted - jnp.log(duration.astype(jnp.float32) + 1.0)) ** 2)
    en_loss = jnp.mean((energy_predicted - jnp.log(energy_target + 1.0)) ** 2)
    pit_loss = jnp.mean((pitch_predicted - jnp.log(pitch_target + 1.0)) ** 2)
    return mel_loss + dur_loss + en_loss + pit_loss


if __name__ == "__main__":
    key = jax.random.PRNGKey(0)
    ks = jax.random.split(key, 16)

    def make_inputs(keys, B, T_mel, n_mels, T_src):
        mel_output = jax.random.normal(keys[0], (B, T_mel, n_mels), dtype=jnp.float32)
        mel_target = jax.random.normal(keys[1], (B, T_mel, n_mels), dtype=jnp.float32)
        duration_predicted = jax.random.normal(keys[2], (B, T_src), dtype=jnp.float32)
        duration = jax.random.randint(keys[3], (B, T_src), 0, 10, dtype=jnp.int32)
        energy_predicted = jax.random.normal(keys[4], (B, T_src), dtype=jnp.float32)
        energy_target = jax.random.uniform(keys[5], (B, T_src), dtype=jnp.float32,
                                           maxval=5.0)
        pitch_predicted = jax.random.normal(keys[6], (B, T_src), dtype=jnp.float32)
        pitch_target = jax.random.uniform(keys[7], (B, T_src), dtype=jnp.float32,
                                          maxval=5.0)
        return (mel_output, mel_target, duration_predicted, duration,
                energy_predicted, energy_target, pitch_predicted, pitch_target)

    # Case 1: tiny shapes -> single full-extent mel block (no masking).
    args1 = make_inputs(ks[:8], B=2, T_mel=8, n_mels=32, T_src=8)
    loss1 = jax.block_until_ready(fastspeech_loss(*args1))
    ref1 = jax.block_until_ready(_reference_loss(*args1))
    assert jnp.allclose(loss1, ref1, rtol=1e-5, atol=1e-5), (loss1, ref1)

    # Case 2: small max_tile_rows forces the multi-tile + masked-tail path.
    args2 = make_inputs(ks[8:], B=2, T_mel=50, n_mels=24, T_src=12)
    loss2 = jax.block_until_ready(fastspeech_loss(*args2, max_tile_rows=32))
    ref2 = jax.block_until_ready(_reference_loss(*args2))
    assert jnp.allclose(loss2, ref2, rtol=1e-5, atol=1e-5), (loss2, ref2)

    print("KERNEL_OK")
</pallas_src>

<mosaic_0001>
module attributes {stable_mosaic.version = 11 : i64} {
  func.func @_fastspeech_loss_kernel(%arg0: i32, %arg1: memref<16x32xf32, #tpu.memory_space<vmem>>, %arg2: memref<16x32xf32, #tpu.memory_space<vmem>>, %arg3: memref<2x3x8x128xf32, #tpu.memory_space<vmem>>, %arg4: memref<1x1xf32, #tpu.memory_space<smem>>, %arg5: memref<1x32xf32, #tpu.memory_space<vmem>>) attributes {dimension_semantics = [#tpu.dimension_semantics<arbitrary>], iteration_bounds = array<i64: 1>, scalar_prefetch = 0 : i64, scratch_operands = 1 : i64, tpu.core_type = #tpu.core_type<tc>, window_params = [{transform_indices = @transform_0, window_bounds = array<i64: 16, 32>}, {transform_indices = @transform_1, window_bounds = array<i64: 16, 32>}, {pipeline_mode = #tpu.pipeline_mode<synchronous>, transform_indices = @transform_2, window_bounds = array<i64: 2, 3, 8, 128>}, {transform_indices = @transform_3, window_bounds = array<i64: 1, 1>}]} {
    %c0_i32 = arith.constant 0 : i32
    %0 = arith.cmpi eq, %arg0, %c0_i32 : i32
    %1 = arith.extui %0 : i1 to i32
    %c0_i32_0 = arith.constant 0 : i32
    %2 = arith.cmpi ne, %1, %c0_i32_0 : i32
    scf.if %2 {
      %cst_10 = arith.constant 0.000000e+00 : f32
      %15 = vector.broadcast %cst_10 : f32 to vector<1x32xf32>
      %c0_11 = arith.constant 0 : index
      %c0_12 = arith.constant 0 : index
      %16 = vector.load %arg5[%c0_11, %c0_12] : memref<1x32xf32, #tpu.memory_space<vmem>>, vector<1x32xf32>
      tpu.vector_store %arg5[%c0_11, %c0_12], %15 {strides = array<i32>} : memref<1x32xf32, #tpu.memory_space<vmem>>, vector<1x32xf32>,
    } else {
    }
    %c0 = arith.constant 0 : index
    %c0_1 = arith.constant 0 : index
    %3 = vector.load %arg1[%c0, %c0_1] : memref<16x32xf32, #tpu.memory_space<vmem>>, vector<16x32xf32>
    %c0_2 = arith.constant 0 : index
    %c0_3 = arith.constant 0 : index
    %4 = vector.load %arg2[%c0_2, %c0_3] : memref<16x32xf32, #tpu.memory_space<vmem>>, vector<16x32xf32>
    %5 = arith.subf %3, %4 : vector<16x32xf32>
    %c0_4 = arith.constant 0 : index
    %c0_5 = arith.constant 0 : index
    %6 = vector.load %arg5[%c0_4, %c0_5] : memref<1x32xf32, #tpu.memory_space<vmem>>, vector<1x32xf32>
    %7 = arith.mulf %5, %5 : vector<16x32xf32>
    %cst = arith.constant dense<0.000000e+00> : vector<32xf32>
    %8 = vector.multi_reduction <add>, %7, %cst [0] : vector<16x32xf32> to vector<32xf32>
    %9 = vector.shape_cast %8 : vector<32xf32> to vector<1x32xf32>
    %10 = arith.addf %6, %9 : vector<1x32xf32>
    %c0_6 = arith.constant 0 : index
    %c0_7 = arith.constant 0 : index
    %11 = vector.load %arg5[%c0_6, %c0_7] : memref<1x32xf32, #tpu.memory_space<vmem>>, vector<1x32xf32>
    tpu.vector_store %arg5[%c0_6, %c0_7], %10 {strides = array<i32>} : memref<1x32xf32, #tpu.memory_space<vmem>>, vector<1x32xf32>,
    %c0_i32_8 = arith.constant 0 : i32
    %12 = arith.cmpi eq, %arg0, %c0_i32_8 : i32
    %13 = arith.extui %12 : i1 to i32
    %c0_i32_9 = arith.constant 0 : i32
    %14 = arith.cmpi ne, %13, %c0_i32_9 : i32
    scf.if %14 {
      %c0_10 = arith.constant 0 : index
      %c0_11 = arith.constant 0 : index
      %15 = vector.load %arg5[%c0_10, %c0_11] : memref<1x32xf32, #tpu.memory_space<vmem>>, vector<1x32xf32>
      %16 = vector.shape_cast %15 : vector<1x32xf32> to vector<1x1x32xf32>
      %cst_12 = arith.constant dense<0.000000e+00> : vector<1xf32>
      %17 = vector.multi_reduction <add>, %16, %cst_12 [1, 2] : vector<1x1x32xf32> to vector<1xf32>
      %18 = vector.shape_cast %17 : vector<1xf32> to vector<1x1x1xf32>
      %19 = vector.extract %18[0, 0, 0] : f32 from vector<1x1x1xf32>
      %cst_13 = arith.constant 0.001953125 : f32
      %20 = arith.mulf %19, %cst_13 : f32
      %c0_14 = arith.constant 0 : index
      %c0_15 = arith.constant 0 : index
      %c0_16 = arith.constant 0 : index
      %c0_17 = arith.constant 0 : index
      %21 = vector.load %arg3[%c0_14, %c0_15, %c0_16, %c0_17] : memref<2x3x8x128xf32, #tpu.memory_space<vmem>>, vector<1x3x8x128xf32>
      %22 = vector.shape_cast %21 : vector<1x3x8x128xf32> to vector<3x8x128xf32>
      %c1 = arith.constant 1 : index
      %c0_18 = arith.constant 0 : index
      %c0_19 = arith.constant 0 : index
      %c0_20 = arith.constant 0 : index
      %23 = vector.load %arg3[%c1, %c0_18, %c0_19, %c0_20] : memref<2x3x8x128xf32, #tpu.memory_space<vmem>>, vector<1x3x8x128xf32>
      %24 = vector.shape_cast %23 : vector<1x3x8x128xf32> to vector<3x8x128xf32>
      %cst_21 = arith.constant 1.000000e+00 : f32
      %25 = vector.broadcast %cst_21 : f32 to vector<3x8x128xf32>
      %26 = arith.addf %24, %25 : vector<3x8x128xf32>
      %27 = math.log %26 : vector<3x8x128xf32>
      %28 = arith.subf %22, %27 : vector<3x8x128xf32>
      %29 = arith.mulf %28, %28 : vector<3x8x128xf32>
      %30 = vector.extract_strided_slice %29 {offsets = [0, 0, 0], sizes = [1, 8, 128], strides = [1, 1, 1]} : vector<3x8x128xf32> to vector<1x8x128xf32>
      %31 = vector.shape_cast %30 : vector<1x8x128xf32> to vector<8x128xf32>
      %32 = vector.shape_cast %31 : vector<8x128xf32> to vector<1x8x128xf32>
      %cst_22 = arith.constant dense<0.000000e+00> : vector<1xf32>
      %33 = vector.multi_reduction <add>, %32, %cst_22 [1, 2] : vector<1x8x128xf32> to vector<1xf32>
      %34 = vector.shape_cast %33 : vector<1xf32> to vector<1x1x1xf32>
      %35 = vector.extract %34[0, 0, 0] : f32 from vector<1x1x1xf32>
      %cst_23 = arith.constant 6.250000e-02 : f32
      %36 = arith.mulf %35, %cst_23 : f32
      %37 = vector.extract_strided_slice %29 {offsets = [1, 0, 0], sizes = [1, 8, 128], strides = [1, 1, 1]} : vector<3x8x128xf32> to vector<1x8x128xf32>
      %38 = vector.shape_cast %37 : vector<1x8x128xf32> to vector<8x128xf32>
      %39 = vector.shape_cast %38 : vector<8x128xf32> to vector<1x8x128xf32>
      %cst_24 = arith.constant dense<0.000000e+00> : vector<1xf32>
      %40 = vector.multi_reduction <add>, %39, %cst_24 [1, 2] : vector<1x8x128xf32> to vector<1xf32>
      %41 = vector.shape_cast %40 : vector<1xf32> to vector<1x1x1xf32>
      %42 = vector.extract %41[0, 0, 0] : f32 from vector<1x1x1xf32>
      %cst_25 = arith.constant 6.250000e-02 : f32
      %43 = arith.mulf %42, %cst_25 : f32
      %44 = arith.addf %36, %43 : f32
      %45 = vector.extract_strided_slice %29 {offsets = [2, 0, 0], sizes = [1, 8, 128], strides = [1, 1, 1]} : vector<3x8x128xf32> to vector<1x8x128xf32>
      %46 = vector.shape_cast %45 : vector<1x8x128xf32> to vector<8x128xf32>
      %47 = vector.shape_cast %46 : vector<8x128xf32> to vector<1x8x128xf32>
      %cst_26 = arith.constant dense<0.000000e+00> : vector<1xf32>
      %48 = vector.multi_reduction <add>, %47, %cst_26 [1, 2] : vector<1x8x128xf32> to vector<1xf32>
      %49 = vector.shape_cast %48 : vector<1xf32> to vector<1x1x1xf32>
      %50 = vector.extract %49[0, 0, 0] : f32 from vector<1x1x1xf32>
      %cst_27 = arith.constant 6.250000e-02 : f32
      %51 = arith.mulf %50, %cst_27 : f32
      %52 = arith.addf %44, %51 : f32
      %53 = arith.addf %20, %52 : f32
      %c0_28 = arith.constant 0 : index
      %c0_29 = arith.constant 0 : index
      %54 = memref.load %arg4[%c0_28, %c0_29] : memref<1x1xf32, #tpu.memory_space<smem>>
      memref.store %53, %arg4[%c0_28, %c0_29] : memref<1x1xf32, #tpu.memory_space<smem>>
    } else {
    }
    return
  }
  func.func @transform_0(%arg0: i32) -> (i32, i32) {
    %c0_i32 = arith.constant 0 : i32
    %c0_i32_0 = arith.constant 0 : i32
    return %arg0, %c0_i32 : i32, i32
  }
  func.func @transform_1(%arg0: i32) -> (i32, i32) {
    %c0_i32 = arith.constant 0 : i32
    %c0_i32_0 = arith.constant 0 : i32
    return %arg0, %c0_i32 : i32, i32
  }
  func.func @transform_2(%arg0: i32) -> (i32, i32, i32, i32) {
    %c0_i32 = arith.constant 0 : i32
    %c0_i32_0 = arith.constant 0 : i32
    %c0_i32_1 = arith.constant 0 : i32
    %c0_i32_2 = arith.constant 0 : i32
    %c0_i32_3 = arith.constant 0 : i32
    return %c0_i32, %c0_i32_0, %c0_i32_1, %c0_i32_2 : i32, i32, i32, i32
  }
  func.func @transform_3(%arg0: i32) -> (i32, i32) {
    %c0_i32 = arith.constant 0 : i32
    %c0_i32_0 = arith.constant 0 : i32
    %c0_i32_1 = arith.constant 0 : i32
    return %c0_i32, %c0_i32_0 : i32, i32
  }
}

</mosaic_0001>

<llo_original>
// kernel: tpu_custom_call.1
$region0: #{tpu_custom_call.1}
  #allocation0 [shape = 'u32[]', space=smem, size = 0x4, offset = 0x4, fixed_abs, tag = 'smem constant byte address 0x4 - core index']
  #allocation1 [shape = 'u32[72,128]{1,0:T(1,128)}', space=vmem, size = 0x9000, scoped, tag = 'internal scratch']
  #allocation2 [shape = 'f32[1,32]{1,0:T(1,128)}', space=vmem, size = 0x200, scoped, tag = 'scratch operand']
  %s0 = inlined_call_operand.hbm [shape: f32[16,32], index: 0, kind: input, shape index: {}]
  %s1 = inlined_call_operand.hbm [shape: f32[16,32], index: 1, kind: input, shape index: {}]
  %s2 = inlined_call_operand.hbm [shape: f32[2,3,8,128], index: 2, kind: input, shape index: {}]
  %s3 = inlined_call_operand.hbm [shape: f32[1,1], index: 3, kind: output, shape index: {}]
  %s4 = sld [smem:[#allocation0]]
  $region42: #{tpu_custom_call.1} parent=0
    _
  %s6 = ssub.s32 1, %s4
  %s7 = scalar_select 0, %s6, %s4
  $region1: #{tpu_custom_call.1} parent=0
    #allocation3 [shape = 'u8[8192]{0}', space=vmem, size = 0x2000, scoped, tag = 'input window, operand 0, single buffered']
    #allocation4 [shape = 's32[1]{0}', space=sflag, size = 0x4, scoped, tag = 'scoped memory for tpu_custom_call.1']
    #allocation5 [shape = 's32[1]{0}', space=sflag, size = 0x4, scoped, tag = 'scoped memory for tpu_custom_call.1']
    #allocation6 [shape = 'u8[8192]{0}', space=vmem, size = 0x2000, scoped, tag = 'input window, operand 1, single buffered']
    #allocation7 [shape = 's32[1]{0}', space=sflag, size = 0x4, scoped, tag = 'scoped memory for tpu_custom_call.1']
    #allocation8 [shape = 'u8[24576]{0}', space=vmem, size = 0x6000, scoped, tag = 'input window, operand 2, single buffered']
    #allocation9 [shape = 'u8[512]{0}', space=smem, size = 0x200, scoped, tag = 'output window, operand 0, single buffered']
    %8 = vsyncpa [#allocation4], 0
    %9 = vsyncpa [#allocation7], 0
    %10 = vsyncpa [#allocation5], 0
    // Predicated region
    $region2: #{tpu_custom_call.1} parent=1 // pred_check
      _
    $region3: #{tpu_custom_call.1} parent=1 // pred_check_branch
      %12 = sbr.rel (0) target = $region5
    $region4: #{tpu_custom_call.1} parent=1 // pred_region
      %14 = vsyncadd [#allocation4], 0
      %s15 = sshll.u32 %s0, 4
      %s16 = int_to_ptr.hbm [resolvable:$true] %s15
      %s17 = sshll.u32 [#allocation3], 4
      %s18 = int_to_ptr.vmem [resolvable:$true] %s17
      %23 = dma.hbm_to_vmem [thread:$0]  %s16, 256, %s18, [#allocation4], 128, 128, 8
    $region5: #{tpu_custom_call.1} parent=1 // pred_fallthru
      _
    // Predicated region
    $region6: #{tpu_custom_call.1} parent=1 // pred_check
      _
    $region7: #{tpu_custom_call.1} parent=1 // pred_check_branch
      %25 = sbr.rel (0) target = $region9
    $region8: #{tpu_custom_call.1} parent=1 // pred_region
      %27 = vsyncadd [#allocation7], 0
      %s28 = sshll.u32 %s1, 4
      %s29 = int_to_ptr.hbm [resolvable:$true] %s28
      %s30 = sshll.u32 [#allocation6], 4
      %s31 = int_to_ptr.vmem [resolvable:$true] %s30
      %36 = dma.hbm_to_vmem [thread:$0]  %s29, 256, %s31, [#allocation7], 128, 128, 8
    $region9: #{tpu_custom_call.1} parent=1 // pred_fallthru
      _
    // Predicated region
    $region10: #{tpu_custom_call.1} parent=1 // pred_check
      _
    $region11: #{tpu_custom_call.1} parent=1 // pred_check_branch
      %38 = sbr.rel (0) target = $region13
    $region12: #{tpu_custom_call.1} parent=1 // pred_region
      %40 = vsyncadd [#allocation7], 0
      %s41 = sshll.u32 %s2, 4
      %s42 = int_to_ptr.hbm [resolvable:$true] %s41
      %s43 = sshll.u32 [#allocation8], 4
      %s44 = int_to_ptr.vmem [resolvable:$true] %s43
      %49 = dma.hbm_to_vmem [thread:$0]  %s42, 768, %s44, [#allocation7], 128, 128, 8
    $region13: #{tpu_custom_call.1} parent=1 // pred_fallthru
      _
    // Predicated region
    $region14: #{tpu_custom_call.1} parent=1 // pred_check
      _
    $region15: #{tpu_custom_call.1} parent=1 // pred_check_branch
      %51 = sbr.rel (0) target = $region17
    $region16: #{tpu_custom_call.1} parent=1 // pred_region
      %53 = dma.done [#allocation4], 256
    $region17: #{tpu_custom_call.1} parent=1 // pred_fallthru
      _
    // Predicated region
    $region18: #{tpu_custom_call.1} parent=1 // pred_check
      _
    $region19: #{tpu_custom_call.1} parent=1 // pred_check_branch
      %55 = sbr.rel (0) target = $region21
    $region20: #{tpu_custom_call.1} parent=1 // pred_region
      %57 = dma.done [#allocation7], 256
    $region21: #{tpu_custom_call.1} parent=1 // pred_fallthru
      _
    // Predicated region
    $region22: #{tpu_custom_call.1} parent=1 // pred_check
      _
    $region23: #{tpu_custom_call.1} parent=1 // pred_check_branch
      %59 = sbr.rel (0) target = $region25
    $region24: #{tpu_custom_call.1} parent=1 // pred_region
      %61 = dma.done [#allocation7], 768
    $region25: #{tpu_custom_call.1} parent=1 // pred_fallthru
      _
    %p62 = scmp.eq.s32.totalorder 0, 0
    // Predicated region
    $region26: #{tpu_custom_call.1} parent=1 // pred_check
      %p63 = pneg %p62
    $region27: #{tpu_custom_call.1} parent=1 // pred_check_branch
      %65 = sbr.rel (%p63) target = $region29
    $region28: #{tpu_custom_call.1} parent=1 // pred_region
      %vm66 = vcmask 253952
      %67 = vst.msk [vmem:[#allocation2] sm:$0x1] %vm66, 0.0
    $region29: #{tpu_custom_call.1} parent=1 // pred_fallthru
      _
    %v68 = vld [vmem:[#allocation3] sm:$0xff]
    %v69 = vld [vmem:[#allocation3 + $0x8] sm:$0xff]
    %v70 = vld [vmem:[#allocation6] sm:$0xff]
    %v71 = vld [vmem:[#allocation6 + $0x8] sm:$0xff]
    %v72 = vsub.f32 %v68, %v70
    %v73 = vsub.f32 %v69, %v71
    %v74 = vld [vmem:[#allocation2] sm:$0x1]
    %v75 = vmul.f32 %v72, %v72
    %v76 = vmul.f32 %v73, %v73
    %vm77 = vcmask 261120
    %v78 = vsel %vm77, %v75, 0.0
    %v79 = vsel %vm77, %v76, 0.0
    %v80 = vadd.f32 %v78, %v79
    %v81 = vrot.slane %v80, 4
    %v82 = vadd.f32 %v80, %v81
    %v83 = vrot.slane %v82, 2
    %v84 = vadd.f32 %v82, %v83
    %v85 = vrot.slane %v84, 1
    %v86 = vadd.f32 %v84, %v85
    %v87 = vadd.f32 %v74, %v86
    %vm88 = vcmask 253952
    %89 = vst.msk [vmem:[#allocation2] sm:$0x1] %vm88, %v87
    // Predicated region
    $region30: #{tpu_custom_call.1} parent=1 // pred_check
      %p90 = pneg %p62
    $region31: #{tpu_custom_call.1} parent=1 // pred_check_branch
      %92 = sbr.rel (%p90) target = $region33
    $region32: #{tpu_custom_call.1} parent=1 // pred_region
      %v93 = vld [vmem:[#allocation2] sm:$0x1]
      %v94 = vsel %vm88, %v93, 0.0
      %95 = vadd.xlane.f32.xlu0 %v94
      %v96 = vpop.xlane.xlu0 %95
      %v97 = vrot.slane %v96, 4
      %v98 = vadd.f32 %v96, %v97
      %v99 = vrot.slane %v98, 2
      %v100 = vadd.f32 %v98, %v99
      %v101 = vrot.slane %v100, 1
      %v102 = vadd.f32 %v100, %v101
      %s103 = vtos %v102
      %s104 = smul.f32 %s103, 0.001953125
      %v105 = vld [vmem:[#allocation8] sm:$0xff]
      %v106 = vld [vmem:[#allocation8 + $0x8] sm:$0xff]
      %v107 = vld [vmem:[#allocation8 + $0x10] sm:$0xff]
      %s108 = scalar_lea.vmem [#allocation8], 24
      %v109 = vld [vmem:[%s108] sm:$0xff]
      %v110 = vld [vmem:[%s108 + $0x8] sm:$0xff]
      %v111 = vld [vmem:[%s108 + $0x10] sm:$0xff]
      %v112 = vadd.f32 %v109, 1.0
      %v113 = vadd.f32 %v110, 1.0
      %v114 = vadd.f32 %v111, 1.0
      %v115 = vlog2.pop %v112
      %v116 = vmul.f32 %v115, 0.6931472
      %v117 = vlog2.pop %v113
      %v118 = vmul.f32 %v117, 0.6931472
      %v119 = vlog2.pop %v114
      %v120 = vmul.f32 %v119, 0.6931472
      %v121 = vsub.f32 %v105, %v116
      %v122 = vsub.f32 %v106, %v118
      %v123 = vsub.f32 %v107, %v120
      %v124 = vmul.f32 %v121, %v121
      %v125 = vmul.f32 %v122, %v122
      %v126 = vmul.f32 %v123, %v123
      %127 = vadd.xlane.f32.xlu0 %v124
      %v128 = vpop.xlane.xlu0 %127
      %v129 = vrot.slane %v128, 4
      %v130 = vadd.f32 %v128, %v129
      %v131 = vrot.slane %v130, 2
      %v132 = vadd.f32 %v130, %v131
      %v133 = vrot.slane %v132, 1
      %v134 = vadd.f32 %v132, %v133
      %s135 = vtos %v134
      %s136 = smul.f32 %s135, 0.0625
      %137 = vadd.xlane.f32.xlu0 %v125
      %v138 = vpop.xlane.xlu0 %137
      %v139 = vrot.slane %v138, 4
      %v140 = vadd.f32 %v138, %v139
      %v141 = vrot.slane %v140, 2
      %v142 = vadd.f32 %v140, %v141
      %v143 = vrot.slane %v142, 1
      %v144 = vadd.f32 %v142, %v143
      %s145 = vtos %v144
      %s146 = smul.f32 %s145, 0.0625
      %s147 = sadd.f32 %s136, %s146
      %148 = vadd.xlane.f32.xlu0 %v126
      %v149 = vpop.xlane.xlu0 %148
      %v150 = vrot.slane %v149, 4
      %v151 = vadd.f32 %v149, %v150
      %v152 = vrot.slane %v151, 2
      %v153 = vadd.f32 %v151, %v152
      %v154 = vrot.slane %v153, 1
      %v155 = vadd.f32 %v153, %v154
      %s156 = vtos %v155
      %s157 = smul.f32 %s156, 0.0625
      %s158 = sadd.f32 %s147, %s157
      %s159 = sadd.f32 %s104, %s158
      %s160 = scalar_lea.smem [#allocation9], 0
      %161 = sst [smem:[%s160]] %s159
    $region33: #{tpu_custom_call.1} parent=1 // pred_fallthru
      _
    // Predicated region
    $region34: #{tpu_custom_call.1} parent=1 // pred_check
      _
    $region35: #{tpu_custom_call.1} parent=1 // pred_check_branch
      %163 = sbr.rel (0) target = $region37
    $region36: #{tpu_custom_call.1} parent=1 // pred_region
      %165 = vsyncadd [#allocation5], 0
      %s167 = sshll.u32 %s3, 4
      %s168 = int_to_ptr.hbm [resolvable:$true] %s167
      %170 = dma.smem_to_hbm [#allocation9], 16, %s168, [#allocation5]
    $region37: #{tpu_custom_call.1} parent=1 // pred_fallthru
      _
    // Predicated region
    $region38: #{tpu_custom_call.1} parent=1 // pred_check
      _
    $region39: #{tpu_custom_call.1} parent=1 // pred_check_branch
      %172 = sbr.rel (0) target = $region41
    $region40: #{tpu_custom_call.1} parent=1 // pred_region
      %174 = dma.done [#allocation5], 16
    $region41: #{tpu_custom_call.1} parent=1 // pred_fallthru
      _
    %175 = sfence
    %176 = vsyncpa [#allocation4], 1
    %177 = vsyncpa [#allocation7], 1
    %178 = vsyncpa [#allocation5], 1

</llo_original>
